<compile_context>
chip_gen: v6e
topology: v6e:2x2x1
jax: 0.10.0
libtpu: 0.0.40
codegen_flags: <defaults>
</compile_context>

<pallas_src>
import functools

import jax
import jax.numpy as jnp
from jax.experimental import pallas as pl
from jax.experimental.pallas import tpu as pltpu

LANE = 1024                      # lane width for the flattened reduction kernels
_VMEM_LIMIT = 32 * 1024 * 1024   # explicit scoped-VMEM budget (fits every chip)


def _compiler_params():
    return pltpu.CompilerParams(
        dimension_semantics=("arbitrary",),   # accumulating across the grid
        vmem_limit_bytes=_VMEM_LIMIT)


# ----------------------------------------------------------------------------
# Layout helpers: view a flat tensor as a sublane/lane-dense (rows, LANE)
# matrix.  Zero padding (only when numel is not a multiple of 8*LANE) is exact
# for the reductions used here (|0| = 0, and KL(mu=0, logvar=0) = 0).
# ----------------------------------------------------------------------------
def _to_rows(a, lane=LANE):
    flat = a.reshape(-1).astype(jnp.float32)
    n = flat.shape[0]
    chunk = 8 * lane
    if n % chunk != 0:
        flat = jnp.pad(flat, (0, chunk - n % chunk))
    return flat.reshape(-1, lane)


def _pick_row_tile(rows, max_rows=512):
    for tr in (512, 256, 128, 64, 32, 16, 8):
        if tr <= max_rows and rows % tr == 0:
            return tr
    return 8   # rows is always a multiple of 8 by construction


# ----------------------------------------------------------------------------
# Kernel 1: sum(|x|) and sum(|x - y|) over the whole tensor (grid-reduced).
# From these two sums the wrapper reconstructs exactly:
#   rec_loss = |x - y| / ||x||_1
#   nll_loss = rec_loss / exp(logvar) + logvar
# ----------------------------------------------------------------------------
def _rec_sums_kernel(x_ref, y_ref, out_ref, accx_ref, accd_ref):
    i = pl.program_id(0)

    @pl.when(i == 0)
    def _():
        accx_ref[...] = jnp.zeros_like(accx_ref)
        accd_ref[...] = jnp.zeros_like(accd_ref)

    x = x_ref[...]
    y = y_ref[...]
    # per-block partial reduction -> tiny (1, LANE) accumulators (cheap stores)
    accx_ref[...] += jnp.sum(jnp.abs(x), axis=0, keepdims=True)
    accd_ref[...] += jnp.sum(jnp.abs(x - y), axis=0, keepdims=True)

    @pl.when(i == pl.num_programs(0) - 1)
    def _():
        out_ref[0] = jnp.sum(accx_ref[...])   # sum |x|
        out_ref[1] = jnp.sum(accd_ref[...])   # sum |x - y|


def rec_sums(x, y):
    xr = _to_rows(x)
    yr = _to_rows(y)
    rows = xr.shape[0]
    tr = _pick_row_tile(rows)
    return pl.pallas_call(
        _rec_sums_kernel,
        out_shape=jax.ShapeDtypeStruct((2,), jnp.float32),
        grid_spec=pltpu.PrefetchScalarGridSpec(
            num_scalar_prefetch=0,
            grid=(rows // tr,),
            in_specs=[pl.BlockSpec((tr, LANE), lambda i: (i, 0)),
                      pl.BlockSpec((tr, LANE), lambda i: (i, 0))],
            out_specs=pl.BlockSpec(memory_space=pltpu.MemorySpace.SMEM),
            scratch_shapes=[pltpu.VMEM((1, LANE), jnp.float32),
                            pltpu.VMEM((1, LANE), jnp.float32)],
        ),
        compiler_params=_compiler_params(),
    )(xr, yr)


# ----------------------------------------------------------------------------
# Kernel 2: total KL of a diagonal Gaussian posterior (grid-reduced):
#   sum over all elements of 0.5 * (mu^2 + exp(logvar) - 1 - logvar)
# ----------------------------------------------------------------------------
def _kl_sum_kernel(mu_ref, lv_ref, out_ref, acc_ref):
    i = pl.program_id(0)

    @pl.when(i == 0)
    def _():
        acc_ref[...] = jnp.zeros_like(acc_ref)

    mu = mu_ref[...]
    lv = lv_ref[...]
    kl = 0.5 * (mu * mu + jnp.exp(lv) - 1.0 - lv)
    acc_ref[...] += jnp.sum(kl, axis=0, keepdims=True)

    @pl.when(i == pl.num_programs(0) - 1)
    def _():
        out_ref[0] = jnp.sum(acc_ref[...])


def kl_sum(mu, lv):
    mur = _to_rows(mu)
    lvr = _to_rows(lv)
    rows = mur.shape[0]
    tr = _pick_row_tile(rows)
    return pl.pallas_call(
        _kl_sum_kernel,
        out_shape=jax.ShapeDtypeStruct((1,), jnp.float32),
        grid_spec=pltpu.PrefetchScalarGridSpec(
            num_scalar_prefetch=0,
            grid=(rows // tr,),
            in_specs=[pl.BlockSpec((tr, LANE), lambda i: (i, 0)),
                      pl.BlockSpec((tr, LANE), lambda i: (i, 0))],
            out_specs=pl.BlockSpec(memory_space=pltpu.MemorySpace.SMEM),
            scratch_shapes=[pltpu.VMEM((1, LANE), jnp.float32)],
        ),
        compiler_params=_compiler_params(),
    )(mur, lvr)


# ----------------------------------------------------------------------------
# Kernel 3: tiled per-pixel MLP discriminator + logit statistics.
# Inputs are the NCTHW tensors reshaped (for free) to (B*C, P) with pixels on
# the lane axis; the grid iterates over P with running VMEM accumulators.
# Output (SMEM, 6 raw SUMS; wrapper divides by N once):
#   [sum(logits_real), sum(logits_fake),
#    sum(relu(1 - logits_real)), sum(relu(1 + logits_fake)),
#    sum(softplus(-logits_real)), sum(softplus(logits_fake))]
# ----------------------------------------------------------------------------
def _pick_pixel_tile(bc_rows, p):
    # 2 inputs x 2 pipeline buffers of (bc_rows, tile_p) f32 within ~8 MiB.
    max_tp = max(128, (8 * 1024 * 1024) // (bc_rows * 4 * 4))
    max_tp = (max_tp // 128) * 128
    for tp in (4096, 2048, 1024, 512, 256, 128):
        if tp <= max_tp and p % tp == 0:
            return tp, False
    return max(128, min(1024, max_tp)), True   # pad P, mask inside the kernel


def _disc_stats_kernel(xr_ref, xf_ref, w1t_ref, b1_ref, w2_ref, b2_ref,
                       out_ref, acc_ref, *, batch, channels, p_valid,
                       need_mask):
    i = pl.program_id(0)

    @pl.when(i == 0)
    def _():
        acc_ref[...] = jnp.zeros_like(acc_ref)

    w1t = w1t_ref[...]          # (hidden, C)
    b1 = b1_ref[...]            # (hidden, 1)
    w2 = w2_ref[...]            # (hidden, 1)
    b2 = b2_ref[...]            # (1, 1)
    xr = xr_ref[...]            # (B*C, tp) -- pixels on the lane axis
    xf = xf_ref[...]
    tp = xr.shape[1]

    if need_mask:
        pix = i * tp + jax.lax.broadcasted_iota(jnp.int32, (1, tp), 1)
        valid = (pix < p_valid).astype(jnp.float32)   # (1, tp)
    else:
        valid = None

    def mlp_logits(x_all, b):
        # 1x1x1-conv MLP on the VPU: channel mixing as C broadcast FMAs
        # (C is tiny), second layer as multiply + sublane reduce.
        # No MXU use, no zero-padding of the channel axis.
        acc = b1                                            # (hidden, 1)
        for c in range(channels):
            r = b * channels + c
            acc = acc + w1t[:, c:c + 1] * x_all[r:r + 1, :]
        h = jnp.maximum(acc, 0.0)                           # (hidden, tp)
        return jnp.sum(h * w2, axis=0, keepdims=True) + b2  # (1, tp)

    def softplus(z):   # numerically stable: max(z,0) + log1p(exp(-|z|))
        return jnp.maximum(z, 0.0) + jnp.log1p(jnp.exp(-jnp.abs(z)))

    for b in range(batch):
        lr = mlp_logits(xr, b)
        lf = mlp_logits(xf, b)
        terms = (lr,
                 lf,
                 jnp.maximum(1.0 - lr, 0.0),
                 jnp.maximum(1.0 + lf, 0.0),
                 softplus(-lr),
                 softplus(lf))
        for k, t in enumerate(terms):
            if need_mask:
                t = t * valid
            acc_ref[k:k + 1, :] += t

    @pl.when(i == pl.num_programs(0) - 1)
    def _():
        for k in range(6):
            out_ref[k] = jnp.sum(acc_ref[k:k + 1, :])


def disc_stats(xr_bc, xf_bc, w1t, b1c, w2c, b2, *, batch, channels, p_valid,
               tile_p, need_mask):
    bc, p_pad = xr_bc.shape
    hidden = w1t.shape[0]
    kern = functools.partial(_disc_stats_kernel, batch=batch,
                             channels=channels, p_valid=p_valid,
                             need_mask=need_mask)
    return pl.pallas_call(
        kern,
        out_shape=jax.ShapeDtypeStruct((6,), jnp.float32),
        grid_spec=pltpu.PrefetchScalarGridSpec(
            num_scalar_prefetch=0,
            grid=(p_pad // tile_p,),
            in_specs=[
                pl.BlockSpec((bc, tile_p), lambda i: (0, i)),
                pl.BlockSpec((bc, tile_p), lambda i: (0, i)),
                # tiny weights stay VMEM-resident (constant block index)
                pl.BlockSpec((hidden, channels), lambda i: (0, 0)),
                pl.BlockSpec((hidden, 1), lambda i: (0, 0)),
                pl.BlockSpec((hidden, 1), lambda i: (0, 0)),
                pl.BlockSpec((1, 1), lambda i: (0, 0)),
            ],
            out_specs=pl.BlockSpec(memory_space=pltpu.MemorySpace.SMEM),
            scratch_shapes=[pltpu.VMEM((6, tile_p), jnp.float32)],
        ),
        compiler_params=_compiler_params(),
    )(xr_bc, xf_bc, w1t, b1c, w2c, b2)


# ----------------------------------------------------------------------------
# Plain-Python / glue pieces mirroring the PyTorch module.
# ----------------------------------------------------------------------------
def adopt_weight(weight, global_step, threshold=0, value=0.0):
    if global_step < threshold:
        weight = value
    return weight


class DiagonalGaussianPosterior:
    """Minimal posterior stand-in; kl() runs the Pallas KL kernel and returns
    the TOTAL kl sum (the module immediately does torch.sum(kl)/B anyway)."""

    def __init__(self, mean, logvar):
        self.mean = mean
        self.logvar = logvar

    def kl(self):
        return kl_sum(self.mean, self.logvar)[0]


class PixelMLPDiscriminator:
    """Synthetic deterministic discriminator: per-pixel 2-layer MLP
    (equivalent to two 1x1x1 convs with a ReLU), logits shape (B*T*H*W, 1)."""

    def __init__(self, in_channels, hidden, key):
        k1, k2, k3, k4 = jax.random.split(key, 4)
        self.in_channels = in_channels
        self.hidden = hidden
        self.w1_raw = (0.1 * jax.random.normal(k1, (in_channels, hidden))
                       ).astype(jnp.float32)
        self.b1 = (0.05 * jax.random.normal(k2, (hidden,))).astype(jnp.float32)
        self.w2 = (0.1 * jax.random.normal(k3, (hidden, 1))).astype(jnp.float32)
        self.b2 = (0.05 * jax.random.normal(k4, (1, 1))).astype(jnp.float32)
        # kernel-friendly (tiny) layouts; no 32x channel zero-padding anymore
        self.w1t = jnp.transpose(self.w1_raw)          # (hidden, C)
        self.b1c = self.b1.reshape(hidden, 1)
        self.w2c = self.w2.reshape(hidden, 1)

    def stats(self, x_real, x_fake):
        """Means of [logits_real, logits_fake, relu(1-lr), relu(1+lf),
        softplus(-lr), softplus(lf)] over all pixels."""
        b, c, t, h, w = x_real.shape
        p = t * h * w
        xr = x_real.reshape(b * c, p).astype(jnp.float32)  # free reshape (NCTHW)
        xf = x_fake.reshape(b * c, p).astype(jnp.float32)
        tile_p, need_mask = _pick_pixel_tile(b * c, p)
        if need_mask:
            pad = (-p) % tile_p
            xr = jnp.pad(xr, ((0, 0), (0, pad)))
            xf = jnp.pad(xf, ((0, 0), (0, pad)))
        sums = disc_stats(xr, xf, self.w1t, self.b1c, self.w2c, self.b2,
                          batch=b, channels=c, p_valid=p, tile_p=tile_p,
                          need_mask=need_mask)
        return sums / jnp.float32(b * p)     # scale by 1/N once, on scalars


class LPIPSWithDiscriminatorPallas:
    def __init__(self, discriminator, disc_start, logvar_init=0.0,
                 kl_weight=1.0, pixelloss_weight=1.0, disc_factor=1.0,
                 disc_weight=1.0, perceptual_weight=0.0,
                 disc_conditional=False, disc_loss='hinge'):
        assert disc_loss in ['hinge', 'vanilla']
        self.kl_weight = kl_weight
        self.pixel_weight = pixelloss_weight
        self.perceptual_weight = perceptual_weight
        self.logvar = jnp.float32(logvar_init)          # nn.Parameter(())
        self.discriminator = discriminator
        self.discriminator_iter_start = disc_start
        self.disc_loss = disc_loss
        self.disc_factor = disc_factor
        self.discriminator_weight = disc_weight
        self.disc_conditional = disc_conditional

    def calculate_adaptive_weight(self, nll_loss, g_loss, last_layer=None):
        # TODO(synk): adaptive d_weight needs autograd through the decoder's
        # last layer (not available in this synthetic forward); return 0.0,
        # matching the module's RuntimeError fallback branch.
        return jnp.float32(0.0)

    def __call__(self, inputs, reconstructions, posteriors, optimizer_idx,
                 global_step, last_layer=None, cond=None, split='train',
                 weights=None):
        assert weights is None                 # TODO(synk): per-sample weights branch not implemented
        assert self.perceptual_weight == 0.0   # TODO(synk): LPIPS net is an external pretrained module
        assert cond is None and not self.disc_conditional

        b = inputs.shape[0]
        numel = float(inputs.size)

        sums = rec_sums(inputs, reconstructions)   # [ sum|x| , sum|x - y| ]
        l1_norm = sums[0]                          # torch.norm(inputs, p=1)
        rec_sum = sums[1] / l1_norm                # sum of elementwise rec_loss
        rec_loss_mean = rec_sum / numel            # rec_loss.mean()
        nll_sum = rec_sum / jnp.exp(self.logvar) + self.logvar * numel
        nll_loss = nll_sum / b                     # torch.sum(nll_loss)/shape[0]
        weighted_nll_loss = nll_loss               # weights is None

        kl_loss = posteriors.kl() / b              # torch.sum(posteriors.kl())/B

        stats = self.discriminator.stats(inputs, reconstructions)
        mean_logits_real = stats[0]
        mean_logits_fake = stats[1]
        hinge = 0.5 * (stats[2] + stats[3])
        vanilla = 0.5 * (stats[4] + stats[5])

        if optimizer_idx == 0:
            g_loss = -mean_logits_fake
            if self.disc_factor > 0.0:
                d_weight = self.calculate_adaptive_weight(
                    nll_loss, g_loss, last_layer=last_layer)
            else:
                d_weight = jnp.float32(0.0)
            disc_factor = adopt_weight(self.disc_factor, global_step,
                                       threshold=self.discriminator_iter_start)
            loss = (weighted_nll_loss + self.kl_weight * kl_loss
                    + d_weight * disc_factor * g_loss)
            log = {
                '{}/total_loss'.format(split): loss,
                '{}/logvar'.format(split): self.logvar,
                '{}/kl_loss'.format(split): kl_loss,
                '{}/nll_loss'.format(split): nll_loss,
                '{}/rec_loss'.format(split): rec_loss_mean,
                '{}/d_weight'.format(split): d_weight,
                '{}/disc_factor'.format(split): jnp.float32(disc_factor),
                '{}/g_loss'.format(split): g_loss,
            }
            return loss, log

        if optimizer_idx == 1:
            disc_factor = adopt_weight(self.disc_factor, global_step,
                                       threshold=self.discriminator_iter_start)
            core = hinge if self.disc_loss == 'hinge' else vanilla
            d_loss = disc_factor * core
            log = {
                '{}/disc_loss'.format(split): d_loss,
                '{}/logits_real'.format(split): mean_logits_real,
                '{}/logits_fake'.format(split): mean_logits_fake,
            }
            return d_loss, log


# ----------------------------------------------------------------------------
# Demo / correctness check.
# ----------------------------------------------------------------------------
if __name__ == "__main__":
    key = jax.random.PRNGKey(0)
    k1, k2, k3, k4, k5 = jax.random.split(key, 5)

    B, C, T, H, W = 2, 4, 8, 16, 16
    HIDDEN = 32
    inputs = jax.random.normal(k1, (B, C, T, H, W), jnp.float32)
    recon = inputs + 0.1 * jax.random.normal(k2, (B, C, T, H, W), jnp.float32)
    post_mean = jax.random.normal(k3, (B, 4, 8, 4, 4), jnp.float32)
    post_logvar = 0.1 * jax.random.normal(k4, (B, 4, 8, 4, 4), jnp.float32)
    posteriors = DiagonalGaussianPosterior(post_mean, post_logvar)

    disc = PixelMLPDiscriminator(in_channels=C, hidden=HIDDEN, key=k5)
    loss_hinge = LPIPSWithDiscriminatorPallas(
        discriminator=disc, disc_start=100, logvar_init=0.0, kl_weight=1.0,
        disc_factor=1.0, disc_weight=1.0, perceptual_weight=0.0,
        disc_loss='hinge')
    loss_van = LPIPSWithDiscriminatorPallas(
        discriminator=disc, disc_start=100, logvar_init=0.0, kl_weight=1.0,
        disc_factor=1.0, disc_weight=1.0, perceptual_weight=0.0,
        disc_loss='vanilla')

    # generator step (global_step below disc_start -> disc_factor adopted to 0)
    loss_g, log_g = loss_hinge(inputs, recon, posteriors,
                               optimizer_idx=0, global_step=50)
    # discriminator steps (past disc_start), both loss flavors
    loss_d, log_d = loss_hinge(inputs, recon, posteriors,
                               optimizer_idx=1, global_step=200)
    loss_dv, _ = loss_van(inputs, recon, posteriors,
                          optimizer_idx=1, global_step=200)
    jax.block_until_ready((loss_g, loss_d, loss_dv))

    # ---- plain-JAX reference for a sanity check ----
    l1 = jnp.sum(jnp.abs(inputs))
    rec_ref = jnp.abs(inputs - recon) / l1
    nll_loss_ref = jnp.sum(rec_ref) / B          # logvar == 0
    kl_ref = 0.5 * jnp.sum(post_mean ** 2 + jnp.exp(post_logvar)
                           - 1.0 - post_logvar) / B
    loss_g_ref = nll_loss_ref + kl_ref  # d_weight = 0, disc_factor adopted to 0

    def ref_logits(x):
        xp = jnp.transpose(x, (0, 2, 3, 4, 1)).reshape(-1, C)
        h = jnp.maximum(
            jnp.dot(xp, disc.w1_raw, precision=jax.lax.Precision.HIGHEST)
            + disc.b1[None, :], 0.0)
        return (jnp.dot(h, disc.w2, precision=jax.lax.Precision.HIGHEST)
                + disc.b2[0])

    lr_ref = ref_logits(inputs)
    lf_ref = ref_logits(recon)
    d_hinge_ref = 0.5 * (jnp.mean(jnp.maximum(1.0 - lr_ref, 0.0))
                         + jnp.mean(jnp.maximum(1.0 + lf_ref, 0.0)))
    d_vanilla_ref = 0.5 * (jnp.mean(jax.nn.softplus(-lr_ref))
                           + jnp.mean(jax.nn.softplus(lf_ref)))

    assert jnp.allclose(loss_g, loss_g_ref, rtol=1e-4, atol=1e-5), (loss_g, loss_g_ref)
    assert jnp.allclose(log_g['train/nll_loss'], nll_loss_ref, rtol=1e-4, atol=1e-5)
    assert jnp.allclose(log_g['train/kl_loss'], kl_ref, rtol=1e-4, atol=1e-5)
    assert jnp.allclose(log_g['train/rec_loss'], jnp.mean(rec_ref), rtol=1e-4, atol=1e-6)
    assert jnp.allclose(loss_d, d_hinge_ref, rtol=1e-3, atol=1e-4), (loss_d, d_hinge_ref)
    assert jnp.allclose(loss_dv, d_vanilla_ref, rtol=1e-3, atol=1e-4), (loss_dv, d_vanilla_ref)
    assert jnp.allclose(log_d['train/logits_real'], jnp.mean(lr_ref), rtol=1e-3, atol=1e-4)
    assert jnp.allclose(log_d['train/logits_fake'], jnp.mean(lf_ref), rtol=1e-3, atol=1e-4)

    print("KERNEL_OK")
</pallas_src>

<mosaic_0001>
module attributes {stable_mosaic.version = 11 : i64} {
  func.func @_rec_sums_kernel(%arg0: i32, %arg1: memref<16x1024xf32, #tpu.memory_space<vmem>>, %arg2: memref<16x1024xf32, #tpu.memory_space<vmem>>, %arg3: memref<2xf32, #tpu.memory_space<smem>>, %arg4: memref<1x1024xf32, #tpu.memory_space<vmem>>, %arg5: memref<1x1024xf32, #tpu.memory_space<vmem>>) attributes {dimension_semantics = [#tpu.dimension_semantics<arbitrary>], iteration_bounds = array<i64: 1>, scalar_prefetch = 0 : i64, scratch_operands = 2 : i64, tpu.core_type = #tpu.core_type<tc>, window_params = [{transform_indices = @transform_0, window_bounds = array<i64: 16, 1024>}, {transform_indices = @transform_1, window_bounds = array<i64: 16, 1024>}, {transform_indices = @transform_2, window_bounds = array<i64: 2>}]} {
    %c0_i32 = arith.constant 0 : i32
    %0 = arith.cmpi eq, %arg0, %c0_i32 : i32
    %1 = arith.extui %0 : i1 to i32
    %c0_i32_0 = arith.constant 0 : i32
    %2 = arith.cmpi ne, %1, %c0_i32_0 : i32
    scf.if %2 {
      %cst_15 = arith.constant 0.000000e+00 : f32
      %21 = vector.broadcast %cst_15 : f32 to vector<1x1024xf32>
      %c0_16 = arith.constant 0 : index
      %c0_17 = arith.constant 0 : index
      %22 = vector.load %arg4[%c0_16, %c0_17] : memref<1x1024xf32, #tpu.memory_space<vmem>>, vector<1x1024xf32>
      tpu.vector_store %arg4[%c0_16, %c0_17], %21 {strides = array<i32>} : memref<1x1024xf32, #tpu.memory_space<vmem>>, vector<1x1024xf32>,
      %cst_18 = arith.constant 0.000000e+00 : f32
      %23 = vector.broadcast %cst_18 : f32 to vector<1x1024xf32>
      %c0_19 = arith.constant 0 : index
      %c0_20 = arith.constant 0 : index
      %24 = vector.load %arg5[%c0_19, %c0_20] : memref<1x1024xf32, #tpu.memory_space<vmem>>, vector<1x1024xf32>
      tpu.vector_store %arg5[%c0_19, %c0_20], %23 {strides = array<i32>} : memref<1x1024xf32, #tpu.memory_space<vmem>>, vector<1x1024xf32>,
    } else {
    }
    %c0 = arith.constant 0 : index
    %c0_1 = arith.constant 0 : index
    %3 = vector.load %arg1[%c0, %c0_1] : memref<16x1024xf32, #tpu.memory_space<vmem>>, vector<16x1024xf32>
    %c0_2 = arith.constant 0 : index
    %c0_3 = arith.constant 0 : index
    %4 = vector.load %arg2[%c0_2, %c0_3] : memref<16x1024xf32, #tpu.memory_space<vmem>>, vector<16x1024xf32>
    %c0_4 = arith.constant 0 : index
    %c0_5 = arith.constant 0 : index
    %5 = vector.load %arg4[%c0_4, %c0_5] : memref<1x1024xf32, #tpu.memory_space<vmem>>, vector<1x1024xf32>
    %6 = math.absf %3 : vector<16x1024xf32>
    %cst = arith.constant dense<0.000000e+00> : vector<1024xf32>
    %7 = vector.multi_reduction <add>, %6, %cst [0] : vector<16x1024xf32> to vector<1024xf32>
    %8 = vector.shape_cast %7 : vector<1024xf32> to vector<1x1024xf32>
    %9 = arith.addf %5, %8 : vector<1x1024xf32>
    %c0_6 = arith.constant 0 : index
    %c0_7 = arith.constant 0 : index
    %10 = vector.load %arg4[%c0_6, %c0_7] : memref<1x1024xf32, #tpu.memory_space<vmem>>, vector<1x1024xf32>
    tpu.vector_store %arg4[%c0_6, %c0_7], %9 {strides = array<i32>} : memref<1x1024xf32, #tpu.memory_space<vmem>>, vector<1x1024xf32>,
    %c0_8 = arith.constant 0 : index
    %c0_9 = arith.constant 0 : index
    %11 = vector.load %arg5[%c0_8, %c0_9] : memref<1x1024xf32, #tpu.memory_space<vmem>>, vector<1x1024xf32>
    %12 = arith.subf %3, %4 : vector<16x1024xf32>
    %13 = math.absf %12 : vector<16x1024xf32>
    %cst_10 = arith.constant dense<0.000000e+00> : vector<1024xf32>
    %14 = vector.multi_reduction <add>, %13, %cst_10 [0] : vector<16x1024xf32> to vector<1024xf32>
    %15 = vector.shape_cast %14 : vector<1024xf32> to vector<1x1024xf32>
    %16 = arith.addf %11, %15 : vector<1x1024xf32>
    %c0_11 = arith.constant 0 : index
    %c0_12 = arith.constant 0 : index
    %17 = vector.load %arg5[%c0_11, %c0_12] : memref<1x1024xf32, #tpu.memory_space<vmem>>, vector<1x1024xf32>
    tpu.vector_store %arg5[%c0_11, %c0_12], %16 {strides = array<i32>} : memref<1x1024xf32, #tpu.memory_space<vmem>>, vector<1x1024xf32>,
    %c0_i32_13 = arith.constant 0 : i32
    %18 = arith.cmpi eq, %arg0, %c0_i32_13 : i32
    %19 = arith.extui %18 : i1 to i32
    %c0_i32_14 = arith.constant 0 : i32
    %20 = arith.cmpi ne, %19, %c0_i32_14 : i32
    scf.if %20 {
      %c0_15 = arith.constant 0 : index
      %c0_16 = arith.constant 0 : index
      %21 = vector.load %arg4[%c0_15, %c0_16] : memref<1x1024xf32, #tpu.memory_space<vmem>>, vector<1x1024xf32>
      %22 = vector.shape_cast %21 : vector<1x1024xf32> to vector<1x1x1024xf32>
      %cst_17 = arith.constant dense<0.000000e+00> : vector<1xf32>
      %23 = vector.multi_reduction <add>, %22, %cst_17 [1, 2] : vector<1x1x1024xf32> to vector<1xf32>
      %24 = vector.shape_cast %23 : vector<1xf32> to vector<1x1x1xf32>
      %25 = vector.extract %24[0, 0, 0] : f32 from vector<1x1x1xf32>
      %c0_18 = arith.constant 0 : index
      %26 = memref.load %arg3[%c0_18] : memref<2xf32, #tpu.memory_space<smem>>
      memref.store %25, %arg3[%c0_18] : memref<2xf32, #tpu.memory_space<smem>>
      %c0_19 = arith.constant 0 : index
      %c0_20 = arith.constant 0 : index
      %27 = vector.load %arg5[%c0_19, %c0_20] : memref<1x1024xf32, #tpu.memory_space<vmem>>, vector<1x1024xf32>
      %28 = vector.shape_cast %27 : vector<1x1024xf32> to vector<1x1x1024xf32>
      %cst_21 = arith.constant dense<0.000000e+00> : vector<1xf32>
      %29 = vector.multi_reduction <add>, %28, %cst_21 [1, 2] : vector<1x1x1024xf32> to vector<1xf32>
      %30 = vector.shape_cast %29 : vector<1xf32> to vector<1x1x1xf32>
      %31 = vector.extract %30[0, 0, 0] : f32 from vector<1x1x1xf32>
      %c1 = arith.constant 1 : index
      %32 = memref.load %arg3[%c1] : memref<2xf32, #tpu.memory_space<smem>>
      memref.store %31, %arg3[%c1] : memref<2xf32, #tpu.memory_space<smem>>
    } else {
    }
    return
  }
  func.func @transform_0(%arg0: i32) -> (i32, i32) {
    %c0_i32 = arith.constant 0 : i32
    %c0_i32_0 = arith.constant 0 : i32
    return %arg0, %c0_i32 : i32, i32
  }
  func.func @transform_1(%arg0: i32) -> (i32, i32) {
    %c0_i32 = arith.constant 0 : i32
    %c0_i32_0 = arith.constant 0 : i32
    return %arg0, %c0_i32 : i32, i32
  }
  func.func @transform_2(%arg0: i32) -> i32 {
    %c0_i32 = arith.constant 0 : i32
    %c0_i32_0 = arith.constant 0 : i32
    return %c0_i32 : i32
  }
}

</mosaic_0001>

<llo_original>
// kernel: tpu_custom_call.1
$region0: #{tpu_custom_call.1}
  #allocation0 [shape = 'u32[]', space=smem, size = 0x4, offset = 0x4, fixed_abs, tag = 'smem constant byte address 0x4 - core index']
  #allocation1 [shape = 'u32[144,128]{1,0:T(1,128)}', space=vmem, size = 0x12000, scoped, tag = 'internal scratch']
  #allocation2 [shape = 'f32[1,1024]{1,0:T(1,128)}', space=vmem, size = 0x1000, scoped, tag = 'scratch operand']
  #allocation3 [shape = 'f32[1,1024]{1,0:T(1,128)}', space=vmem, size = 0x1000, scoped, tag = 'scratch operand']
  %s0 = inlined_call_operand.hbm [shape: f32[16,1024], index: 0, kind: input, shape index: {}]
  %s1 = inlined_call_operand.hbm [shape: f32[16,1024], index: 1, kind: input, shape index: {}]
  %s2 = inlined_call_operand.hbm [shape: f32[2], index: 2, kind: output, shape index: {}]
  %s3 = sld [smem:[#allocation0]]
  $region34: #{tpu_custom_call.1} parent=0
    _
  %s5 = ssub.s32 1, %s3
  %s6 = scalar_select 0, %s5, %s3
  $region1: #{tpu_custom_call.1} parent=0
    #allocation4 [shape = 'u8[65536]{0}', space=vmem, size = 0x10000, scoped, tag = 'input window, operand 0, single buffered']
    #allocation5 [shape = 's32[1]{0}', space=sflag, size = 0x4, scoped, tag = 'scoped memory for tpu_custom_call.1']
    #allocation6 [shape = 's32[1]{0}', space=sflag, size = 0x4, scoped, tag = 'scoped memory for tpu_custom_call.1']
    #allocation7 [shape = 'u8[65536]{0}', space=vmem, size = 0x10000, scoped, tag = 'input window, operand 1, single buffered']
    #allocation8 [shape = 's32[1]{0}', space=sflag, size = 0x4, scoped, tag = 'scoped memory for tpu_custom_call.1']
    #allocation9 [shape = 'u8[512]{0}', space=smem, size = 0x200, scoped, tag = 'output window, operand 0, single buffered']
    %7 = vsyncpa [#allocation5], 0
    %8 = vsyncpa [#allocation8], 0
    %9 = vsyncpa [#allocation6], 0
    // Predicated region
    $region2: #{tpu_custom_call.1} parent=1 // pred_check
      _
    $region3: #{tpu_custom_call.1} parent=1 // pred_check_branch
      %11 = sbr.rel (0) target = $region5
    $region4: #{tpu_custom_call.1} parent=1 // pred_region
      %s13 = ssub.s32 2048, 2048
      %14 = vsyncadd [#allocation5], %s13
      %s15 = sshll.u32 [#allocation4], 4
      %s16 = int_to_ptr.vmem [resolvable:$true] %s15
      %21 = dma.hbm_to_vmem [thread:$0]  %s0, 2048, %s16, [#allocation5], 1024, 1024, 64
    $region5: #{tpu_custom_call.1} parent=1 // pred_fallthru
      _
    // Predicated region
    $region6: #{tpu_custom_call.1} parent=1 // pred_check
      _
    $region7: #{tpu_custom_call.1} parent=1 // pred_check_branch
      %23 = sbr.rel (0) target = $region9
    $region8: #{tpu_custom_call.1} parent=1 // pred_region
      %s25 = ssub.s32 2048, 2048
      %26 = vsyncadd [#allocation8], %s25
      %s27 = sshll.u32 [#allocation7], 4
      %s28 = int_to_ptr.vmem [resolvable:$true] %s27
      %33 = dma.hbm_to_vmem [thread:$0]  %s1, 2048, %s28, [#allocation8], 1024, 1024, 64
    $region9: #{tpu_custom_call.1} parent=1 // pred_fallthru
      _
    // Predicated region
    $region10: #{tpu_custom_call.1} parent=1 // pred_check
      _
    $region11: #{tpu_custom_call.1} parent=1 // pred_check_branch
      %35 = sbr.rel (0) target = $region13
    $region12: #{tpu_custom_call.1} parent=1 // pred_region
      %36 = dma.done [#allocation5], 2048
    $region13: #{tpu_custom_call.1} parent=1 // pred_fallthru
      _
    // Predicated region
    $region14: #{tpu_custom_call.1} parent=1 // pred_check
      _
    $region15: #{tpu_custom_call.1} parent=1 // pred_check_branch
      %38 = sbr.rel (0) target = $region17
    $region16: #{tpu_custom_call.1} parent=1 // pred_region
      %39 = dma.done [#allocation8], 2048
    $region17: #{tpu_custom_call.1} parent=1 // pred_fallthru
      _
    %p40 = scmp.eq.s32.totalorder 0, 0
    // Predicated region
    $region18: #{tpu_custom_call.1} parent=1 // pred_check
      %p41 = pneg %p40
    $region19: #{tpu_custom_call.1} parent=1 // pred_check_branch
      %43 = sbr.rel (%p41) target = $region21
    $region20: #{tpu_custom_call.1} parent=1 // pred_region
      %44 = vst [vmem:[#allocation2] sm:$0xff] 0.0
      %45 = vst [vmem:[#allocation3] sm:$0xff] 0.0
    $region21: #{tpu_custom_call.1} parent=1 // pred_fallthru
      _
    %v46 = vld [vmem:[#allocation4] sm:$0xff]
    %v47 = vld [vmem:[#allocation4 + $0x8] sm:$0xff]
    %v48 = vld [vmem:[#allocation4 + $0x10] sm:$0xff]
    %v49 = vld [vmem:[#allocation4 + $0x18] sm:$0xff]
    %v50 = vld [vmem:[#allocation4 + $0x20] sm:$0xff]
    %v51 = vld [vmem:[#allocation4 + $0x28] sm:$0xff]
    %v52 = vld [vmem:[#allocation4 + $0x30] sm:$0xff]
    %v53 = vld [vmem:[#allocation4 + $0x38] sm:$0xff]
    %v54 = vld [vmem:[#allocation4 + $0x40] sm:$0xff]
    %v55 = vld [vmem:[#allocation4 + $0x48] sm:$0xff]
    %v56 = vld [vmem:[#allocation4 + $0x50] sm:$0xff]
    %v57 = vld [vmem:[#allocation4 + $0x58] sm:$0xff]
    %v58 = vld [vmem:[#allocation4 + $0x60] sm:$0xff]
    %v59 = vld [vmem:[#allocation4 + $0x68] sm:$0xff]
    %v60 = vld [vmem:[#allocation4 + $0x70] sm:$0xff]
    %v61 = vld [vmem:[#allocation4 + $0x78] sm:$0xff]
    %v62 = vld [vmem:[#allocation7] sm:$0xff]
    %v63 = vld [vmem:[#allocation7 + $0x8] sm:$0xff]
    %v64 = vld [vmem:[#allocation7 + $0x10] sm:$0xff]
    %v65 = vld [vmem:[#allocation7 + $0x18] sm:$0xff]
    %v66 = vld [vmem:[#allocation7 + $0x20] sm:$0xff]
    %v67 = vld [vmem:[#allocation7 + $0x28] sm:$0xff]
    %v68 = vld [vmem:[#allocation7 + $0x30] sm:$0xff]
    %v69 = vld [vmem:[#allocation7 + $0x38] sm:$0xff]
    %v70 = vld [vmem:[#allocation7 + $0x40] sm:$0xff]
    %v71 = vld [vmem:[#allocation7 + $0x48] sm:$0xff]
    %v72 = vld [vmem:[#allocation7 + $0x50] sm:$0xff]
    %v73 = vld [vmem:[#allocation7 + $0x58] sm:$0xff]
    %v74 = vld [vmem:[#allocation7 + $0x60] sm:$0xff]
    %v75 = vld [vmem:[#allocation7 + $0x68] sm:$0xff]
    %v76 = vld [vmem:[#allocation7 + $0x70] sm:$0xff]
    %v77 = vld [vmem:[#allocation7 + $0x78] sm:$0xff]
    %v78 = vld [vmem:[#allocation2] sm:$0xff]
    %v79 = vand.u32 2147483647, %v46
    %v80 = vand.u32 2147483647, %v47
    %v81 = vand.u32 2147483647, %v48
    %v82 = vand.u32 2147483647, %v49
    %v83 = vand.u32 2147483647, %v50
    %v84 = vand.u32 2147483647, %v51
    %v85 = vand.u32 2147483647, %v52
    %v86 = vand.u32 2147483647, %v53
    %v87 = vand.u32 2147483647, %v54
    %v88 = vand.u32 2147483647, %v55
    %v89 = vand.u32 2147483647, %v56
    %v90 = vand.u32 2147483647, %v57
    %v91 = vand.u32 2147483647, %v58
    %v92 = vand.u32 2147483647, %v59
    %v93 = vand.u32 2147483647, %v60
    %v94 = vand.u32 2147483647, %v61
    %v95 = vadd.f32 %v79, %v87
    %v96 = vrot.slane %v95, 4
    %v97 = vadd.f32 %v95, %v96
    %v98 = vrot.slane %v97, 2
    %v99 = vadd.f32 %v97, %v98
    %v100 = vrot.slane %v99, 1
    %v101 = vadd.f32 %v99, %v100
    %v102 = vadd.f32 %v80, %v88
    %v103 = vrot.slane %v102, 4
    %v104 = vadd.f32 %v102, %v103
    %v105 = vrot.slane %v104, 2
    %v106 = vadd.f32 %v104, %v105
    %v107 = vrot.slane %v106, 1
    %v108 = vadd.f32 %v106, %v107
    %v109 = vadd.f32 %v81, %v89
    %v110 = vrot.slane %v109, 4
    %v111 = vadd.f32 %v109, %v110
    %v112 = vrot.slane %v111, 2
    %v113 = vadd.f32 %v111, %v112
    %v114 = vrot.slane %v113, 1
    %v115 = vadd.f32 %v113, %v114
    %v116 = vadd.f32 %v82, %v90
    %v117 = vrot.slane %v116, 4
    %v118 = vadd.f32 %v116, %v117
    %v119 = vrot.slane %v118, 2
    %v120 = vadd.f32 %v118, %v119
    %v121 = vrot.slane %v120, 1
    %v122 = vadd.f32 %v120, %v121
    %v123 = vadd.f32 %v83, %v91
    %v124 = vrot.slane %v123, 4
    %v125 = vadd.f32 %v123, %v124
    %v126 = vrot.slane %v125, 2
    %v127 = vadd.f32 %v125, %v126
    %v128 = vrot.slane %v127, 1
    %v129 = vadd.f32 %v127, %v128
    %v130 = vadd.f32 %v84, %v92
    %v131 = vrot.slane %v130, 4
    %v132 = vadd.f32 %v130, %v131
    %v133 = vrot.slane %v132, 2
    %v134 = vadd.f32 %v132, %v133
    %v135 = vrot.slane %v134, 1
    %v136 = vadd.f32 %v134, %v135
    %v137 = vadd.f32 %v85, %v93
    %v138 = vrot.slane %v137, 4
    %v139 = vadd.f32 %v137, %v138
    %v140 = vrot.slane %v139, 2
    %v141 = vadd.f32 %v139, %v140
    %v142 = vrot.slane %v141, 1
    %v143 = vadd.f32 %v141, %v142
    %v144 = vadd.f32 %v86, %v94
    %v145 = vrot.slane %v144, 4
    %v146 = vadd.f32 %v144, %v145
    %v147 = vrot.slane %v146, 2
    %v148 = vadd.f32 %v146, %v147
    %v149 = vrot.slane %v148, 1
    %v150 = vadd.f32 %v148, %v149
    %v159 = vcombine.low %v101, %v108
    %v160 = vcombine.low %v115, %v122
    %v161 = vcombine.low %v129, %v136
    %v162 = vcombine.low %v143, %v150
    %v164 = vunpack.c.l.s4 1966171168
    %v165 = vunpack.c.0.s8 %v164
    %v166 = vlaneseq
    %v167 = vshrl.u32 %v166, 7
    %v168 = vsub.s32 %v165, %v167
    %v169 = vrot.slane %v159, %v168
    %v171 = vunpack.c.l.s4 1966171168
    %v172 = vunpack.c.0.s8 %v171
    %v173 = vlaneseq
    %v174 = vshrl.u32 %v173, 7
    %v175 = vsub.s32 %v172, %v174
    %v176 = vrot.slane %v160, %v175
    %v178 = vunpack.c.l.s4 1966171168
    %v179 = vunpack.c.0.s8 %v178
    %v180 = vlaneseq
    %v181 = vshrl.u32 %v180, 7
    %v182 = vsub.s32 %v179, %v181
    %v183 = vrot.slane %v161, %v182
    %v185 = vunpack.c.l.s4 1966171168
    %v186 = vunpack.c.0.s8 %v185
    %v187 = vlaneseq
    %v188 = vshrl.u32 %v187, 7
    %v189 = vsub.s32 %v186, %v188
    %v190 = vrot.slane %v162, %v189
    %v191 = vcombine.low %v169, %v176
    %v192 = vcombine.low %v183, %v190
    %v194 = vunpack.c.l.s4 1966171168
    %v195 = vunpack.c.0.s8 %v194
    %v196 = vlaneseq
    %v197 = vshrl.u32 %v196, 7
    %v198 = vsub.s32 %v195, %v197
    %v199 = vrot.slane %v191, %v198
    %v201 = vunpack.c.l.s4 1966171168
    %v202 = vunpack.c.0.s8 %v201
    %v203 = vlaneseq
    %v204 = vshrl.u32 %v203, 7
    %v205 = vsub.s32 %v202, %v204
    %v206 = vrot.slane %v192, %v205
    %v207 = vcombine.low %v199, %v206
    %v209 = vadd.f32 %v78, %v207
    %210 = vst [vmem:[#allocation2] sm:$0xff] %v209
    %v211 = vld [vmem:[#allocation3] sm:$0xff]
    %v212 = vsub.f32 %v46, %v62
    %v213 = vsub.f32 %v47, %v63
    %v214 = vsub.f32 %v48, %v64
    %v215 = vsub.f32 %v49, %v65
    %v216 = vsub.f32 %v50, %v66
    %v217 = vsub.f32 %v51, %v67
    %v218 = vsub.f32 %v52, %v68
    %v219 = vsub.f32 %v53, %v69
    %v220 = vsub.f32 %v54, %v70
    %v221 = vsub.f32 %v55, %v71
    %v222 = vsub.f32 %v56, %v72
    %v223 = vsub.f32 %v57, %v73
    %v224 = vsub.f32 %v58, %v74
    %v225 = vsub.f32 %v59, %v75
    %v226 = vsub.f32 %v60, %v76
    %v227 = vsub.f32 %v61, %v77
    %v228 = vand.u32 2147483647, %v212
    %v229 = vand.u32 2147483647, %v213
    %v230 = vand.u32 2147483647, %v214
    %v231 = vand.u32 2147483647, %v215
    %v232 = vand.u32 2147483647, %v216
    %v233 = vand.u32 2147483647, %v217
    %v234 = vand.u32 2147483647, %v218
    %v235 = vand.u32 2147483647, %v219
    %v236 = vand.u32 2147483647, %v220
    %v237 = vand.u32 2147483647, %v221
    %v238 = vand.u32 2147483647, %v222
    %v239 = vand.u32 2147483647, %v223
    %v240 = vand.u32 2147483647, %v224
    %v241 = vand.u32 2147483647, %v225
    %v242 = vand.u32 2147483647, %v226
    %v243 = vand.u32 2147483647, %v227
    %v244 = vadd.f32 %v228, %v236
    %v245 = vrot.slane %v244, 4
    %v246 = vadd.f32 %v244, %v245
    %v247 = vrot.slane %v246, 2
    %v248 = vadd.f32 %v246, %v247
    %v249 = vrot.slane %v248, 1
    %v250 = vadd.f32 %v248, %v249
    %v251 = vadd.f32 %v229, %v237
    %v252 = vrot.slane %v251, 4
    %v253 = vadd.f32 %v251, %v252
    %v254 = vrot.slane %v253, 2
    %v255 = vadd.f32 %v253, %v254
    %v256 = vrot.slane %v255, 1
    %v257 = vadd.f32 %v255, %v256
    %v258 = vadd.f32 %v230, %v238
    %v259 = vrot.slane %v258, 4
    %v260 = vadd.f32 %v258, %v259
    %v261 = vrot.slane %v260, 2
    %v262 = vadd.f32 %v260, %v261
    %v263 = vrot.slane %v262, 1
    %v264 = vadd.f32 %v262, %v263
    %v265 = vadd.f32 %v231, %v239
    %v266 = vrot.slane %v265, 4
    %v267 = vadd.f32 %v265, %v266
    %v268 = vrot.slane %v267, 2
    %v269 = vadd.f32 %v267, %v268
    %v270 = vrot.slane %v269, 1
    %v271 = vadd.f32 %v269, %v270
    %v272 = vadd.f32 %v232, %v240
    %v273 = vrot.slane %v272, 4
    %v274 = vadd.f32 %v272, %v273
    %v275 = vrot.slane %v274, 2
    %v276 = vadd.f32 %v274, %v275
    %v277 = vrot.slane %v276, 1
    %v278 = vadd.f32 %v276, %v277
    %v279 = vadd.f32 %v233, %v241
    %v280 = vrot.slane %v279, 4
    %v281 = vadd.f32 %v279, %v280
    %v282 = vrot.slane %v281, 2
    %v283 = vadd.f32 %v281, %v282
    %v284 = vrot.slane %v283, 1
    %v285 = vadd.f32 %v283, %v284
    %v286 = vadd.f32 %v234, %v242
    %v287 = vrot.slane %v286, 4
    %v288 = vadd.f32 %v286, %v287
    %v289 = vrot.slane %v288, 2
    %v290 = vadd.f32 %v288, %v289
    %v291 = vrot.slane %v290, 1
    %v292 = vadd.f32 %v290, %v291
    %v293 = vadd.f32 %v235, %v243
    %v294 = vrot.slane %v293, 4
    %v295 = vadd.f32 %v293, %v294
    %v296 = vrot.slane %v295, 2
    %v297 = vadd.f32 %v295, %v296
    %v298 = vrot.slane %v297, 1
    %v299 = vadd.f32 %v297, %v298
    %v308 = vcombine.low %v250, %v257
    %v309 = vcombine.low %v264, %v271
    %v310 = vcombine.low %v278, %v285
    %v311 = vcombine.low %v292, %v299
    %v313 = vunpack.c.l.s4 1966171168
    %v314 = vunpack.c.0.s8 %v313
    %v315 = vlaneseq
    %v316 = vshrl.u32 %v315, 7
    %v317 = vsub.s32 %v314, %v316
    %v318 = vrot.slane %v308, %v317
    %v320 = vunpack.c.l.s4 1966171168
    %v321 = vunpack.c.0.s8 %v320
    %v322 = vlaneseq
    %v323 = vshrl.u32 %v322, 7
    %v324 = vsub.s32 %v321, %v323
    %v325 = vrot.slane %v309, %v324
    %v327 = vunpack.c.l.s4 1966171168
    %v328 = vunpack.c.0.s8 %v327
    %v329 = vlaneseq
    %v330 = vshrl.u32 %v329, 7
    %v331 = vsub.s32 %v328, %v330
    %v332 = vrot.slane %v310, %v331
    %v334 = vunpack.c.l.s4 1966171168
    %v335 = vunpack.c.0.s8 %v334
    %v336 = vlaneseq
    %v337 = vshrl.u32 %v336, 7
    %v338 = vsub.s32 %v335, %v337
    %v339 = vrot.slane %v311, %v338
    %v340 = vcombine.low %v318, %v325
    %v341 = vcombine.low %v332, %v339
    %v343 = vunpack.c.l.s4 1966171168
    %v344 = vunpack.c.0.s8 %v343
    %v345 = vlaneseq
    %v346 = vshrl.u32 %v345, 7
    %v347 = vsub.s32 %v344, %v346
    %v348 = vrot.slane %v340, %v347
    %v350 = vunpack.c.l.s4 1966171168
    %v351 = vunpack.c.0.s8 %v350
    %v352 = vlaneseq
    %v353 = vshrl.u32 %v352, 7
    %v354 = vsub.s32 %v351, %v353
    %v355 = vrot.slane %v341, %v354
    %v356 = vcombine.low %v348, %v355
    %v358 = vadd.f32 %v211, %v356
    %359 = vst [vmem:[#allocation3] sm:$0xff] %v358
    // Predicated region
    $region22: #{tpu_custom_call.1} parent=1 // pred_check
      %p360 = pneg %p40
    $region23: #{tpu_custom_call.1} parent=1 // pred_check_branch
      %362 = sbr.rel (%p360) target = $region25
    $region24: #{tpu_custom_call.1} parent=1 // pred_region
      %v363 = vld [vmem:[#allocation2] sm:$0xff]
      %v365 = vlaneseq
      %v366 = vshrl.u32 %v365, 7
      %v367 = vsub.s32 0, %v366
      %v368 = vrot.slane %v363, %v367
      %v369 = vlaneseq
      %v370 = vshrl.u32 %v369, 7
      %v371 = vsub.s32 1, %v370
      %v372 = vrot.slane %v363, %v371
      %v373 = vlaneseq
      %v374 = vshrl.u32 %v373, 7
      %v375 = vsub.s32 2, %v374
      %v376 = vrot.slane %v363, %v375
      %v377 = vlaneseq
      %v378 = vshrl.u32 %v377, 7
      %v379 = vsub.s32 3, %v378
      %v380 = vrot.slane %v363, %v379
      %v381 = vlaneseq
      %v382 = vshrl.u32 %v381, 7
      %v383 = vsub.s32 4, %v382
      %v384 = vrot.slane %v363, %v383
      %v385 = vlaneseq
      %v386 = vshrl.u32 %v385, 7
      %v387 = vsub.s32 5, %v386
      %v388 = vrot.slane %v363, %v387
      %v389 = vlaneseq
      %v390 = vshrl.u32 %v389, 7
      %v391 = vsub.s32 6, %v390
      %v392 = vrot.slane %v363, %v391
      %v393 = vlaneseq
      %v394 = vshrl.u32 %v393, 7
      %v395 = vsub.s32 7, %v394
      %v396 = vrot.slane %v363, %v395
      %vm405 = vcmask 1040384
      %v406 = vsel %vm405, %v368, 0.0
      %v407 = vsel %vm405, %v372, 0.0
      %v408 = vadd.f32 %v406, %v407
      %v409 = vsel %vm405, %v376, 0.0
      %v410 = vadd.f32 %v408, %v409
      %v411 = vsel %vm405, %v380, 0.0
      %v412 = vadd.f32 %v410, %v411
      %v413 = vsel %vm405, %v384, 0.0
      %v414 = vadd.f32 %v412, %v413
      %v415 = vsel %vm405, %v388, 0.0
      %v416 = vadd.f32 %v414, %v415
      %v417 = vsel %vm405, %v392, 0.0
      %v418 = vadd.f32 %v416, %v417
      %v419 = vsel %vm405, %v396, 0.0
      %v420 = vadd.f32 %v418, %v419
      %421 = vadd.xlane.f32.xlu0 %v420
      %v422 = vpop.xlane.xlu0 %421
      %v423 = vrot.slane %v422, 4
      %v424 = vadd.f32 %v422, %v423
      %v425 = vrot.slane %v424, 2
      %v426 = vadd.f32 %v424, %v425
      %v427 = vrot.slane %v426, 1
      %v428 = vadd.f32 %v426, %v427
      %s429 = vtos %v428
      %s430 = scalar_lea.smem [#allocation9], 0
      %431 = sst [smem:[%s430]] %s429
      %v432 = vld [vmem:[#allocation3] sm:$0xff]
      %v434 = vlaneseq
      %v435 = vshrl.u32 %v434, 7
      %v436 = vsub.s32 0, %v435
      %v437 = vrot.slane %v432, %v436
      %v438 = vlaneseq
      %v439 = vshrl.u32 %v438, 7
      %v440 = vsub.s32 1, %v439
      %v441 = vrot.slane %v432, %v440
      %v442 = vlaneseq
      %v443 = vshrl.u32 %v442, 7
      %v444 = vsub.s32 2, %v443
      %v445 = vrot.slane %v432, %v444
      %v446 = vlaneseq
      %v447 = vshrl.u32 %v446, 7
      %v448 = vsub.s32 3, %v447
      %v449 = vrot.slane %v432, %v448
      %v450 = vlaneseq
      %v451 = vshrl.u32 %v450, 7
      %v452 = vsub.s32 4, %v451
      %v453 = vrot.slane %v432, %v452
      %v454 = vlaneseq
      %v455 = vshrl.u32 %v454, 7
      %v456 = vsub.s32 5, %v455
      %v457 = vrot.slane %v432, %v456
      %v458 = vlaneseq
      %v459 = vshrl.u32 %v458, 7
      %v460 = vsub.s32 6, %v459
      %v461 = vrot.slane %v432, %v460
      %v462 = vlaneseq
      %v463 = vshrl.u32 %v462, 7
      %v464 = vsub.s32 7, %v463
      %v465 = vrot.slane %v432, %v464
      %v474 = vsel %vm405, %v437, 0.0
      %v475 = vsel %vm405, %v441, 0.0
      %v476 = vadd.f32 %v474, %v475
      %v477 = vsel %vm405, %v445, 0.0
      %v478 = vadd.f32 %v476, %v477
      %v479 = vsel %vm405, %v449, 0.0
      %v480 = vadd.f32 %v478, %v479
      %v481 = vsel %vm405, %v453, 0.0
      %v482 = vadd.f32 %v480, %v481
      %v483 = vsel %vm405, %v457, 0.0
      %v484 = vadd.f32 %v482, %v483
      %v485 = vsel %vm405, %v461, 0.0
      %v486 = vadd.f32 %v484, %v485
      %v487 = vsel %vm405, %v465, 0.0
      %v488 = vadd.f32 %v486, %v487
      %489 = vadd.xlane.f32.xlu0 %v488
      %v490 = vpop.xlane.xlu0 %489
      %v491 = vrot.slane %v490, 4
      %v492 = vadd.f32 %v490, %v491
      %v493 = vrot.slane %v492, 2
      %v494 = vadd.f32 %v492, %v493
      %v495 = vrot.slane %v494, 1
      %v496 = vadd.f32 %v494, %v495
      %s497 = vtos %v496
      %s498 = scalar_lea.smem [#allocation9], 1
      %499 = sst [smem:[%s498]] %s497
    $region25: #{tpu_custom_call.1} parent=1 // pred_fallthru
      _
    // Predicated region
    $region26: #{tpu_custom_call.1} parent=1 // pred_check
      _
    $region27: #{tpu_custom_call.1} parent=1 // pred_check_branch
      %501 = sbr.rel (0) target = $region29
    $region28: #{tpu_custom_call.1} parent=1 // pred_region
      %s503 = ssub.s32 16, 16
      %504 = vsyncadd [#allocation6], %s503
      %507 = dma.smem_to_hbm [#allocation9], 16, %s2, [#allocation6]
    $region29: #{tpu_custom_call.1} parent=1 // pred_fallthru
      _
    // Predicated region
    $region30: #{tpu_custom_call.1} parent=1 // pred_check
      _
    $region31: #{tpu_custom_call.1} parent=1 // pred_check_branch
      %509 = sbr.rel (0) target = $region33
    $region32: #{tpu_custom_call.1} parent=1 // pred_region
      %510 = dma.done [#allocation6], 16
    $region33: #{tpu_custom_call.1} parent=1 // pred_fallthru
      _
    %511 = sfence
    %512 = vsyncpa [#allocation5], 1
    %513 = vsyncpa [#allocation8], 1
    %514 = vsyncpa [#allocation6], 1

</llo_original>
